<compile_context>
chip_gen: v5e
topology: v5e:2x2
jax: 0.10.0
libtpu: 0.0.40
codegen_flags: <defaults>
</compile_context>

<pallas_src>
import jax
import jax.numpy as jnp
from jax.experimental import pallas as pl
from jax.experimental.pallas import tpu as pltpu

L = 512          # feature dim (ResNet18 feature size)
D = 128          # attention hidden dim
NUM_CLASSES = 2  # number of heads / classes


# ---------------------------------------------------------------------------
# VMEM budgeting
# ---------------------------------------------------------------------------

def _vmem_capacity_bytes():
    try:
        return int(pltpu.get_tpu_info().vmem_capacity_bytes)
    except Exception:
        return 64 * 1024 * 1024          # conservative fallback (v7x per-TC)


def _vmem_limit_bytes():
    cap = _vmem_capacity_bytes()
    # ~48 MiB on v7x (64 MiB/TC), ~96 MiB on v5e/v6e (128 MiB).
    return max(32 * 1024 * 1024, min(int(cap * 0.75), 96 * 1024 * 1024))


def _step_vmem_bytes(tb, n, l, d, c):
    """Estimated VMEM per grid step, including f32 intermediates."""
    h_tile = tb * n * l * 2                                             # bf16 H block
    weights = l * 2 * d * 2 + 2 * d * 4 + c * d * 2 + c * 4 + c * l * 4
    # f32 vu + f32 gate + bf16 gate copy + broadcast watt + f32 M + attn copies
    inter = tb * n * (2 * d * 4 + d * 4 + d * 2) + tb * c * (d * 2 + l * 4 + 2 * n * 4)
    outs = tb * c * (n + 1) * 4
    # pipelined operands/outputs are double-buffered; intermediates counted once
    return 2 * (h_tile + weights + outs) + inter


def _pick_bag_tile(bs, n, l, d, c):
    budget = int(_vmem_limit_bytes() * 0.6)
    fits = [tb for tb in range(1, bs + 1)
            if bs % tb == 0 and _step_vmem_bytes(tb, n, l, d, c) <= budget]
    if not fits:
        return 1
    best = max(fits)
    # Prefer an even grid (v7x has 2 TensorCores) unless that would shrink the
    # per-step MXU slab below ~256 rows AND below half of the best fitting tile.
    even = [tb for tb in fits if (bs // tb) % 2 == 0]
    if even:
        cand = max(even)
        if cand * n >= 256 or cand * 2 >= best:
            best = cand
    return best


# ---------------------------------------------------------------------------
# Kernel
# ---------------------------------------------------------------------------

def _make_mil_kernel(bag_tile, n_inst, d, c):
    """Fully batched kernel processing `bag_tile` bags (each with n_inst instances)."""

    def kernel(h_ref, wvu_ref, bvu_ref, watt_ref, batt_ref, wcls_ref, y_ref, a_ref):
        tb, n = bag_tile, n_inst
        l = h_ref.shape[-1]

        h3 = h_ref[...]                                     # (TB, N, L) bf16
        h2 = h3.reshape(tb * n, l)                          # free when N % 8 == 0

        # Fused gated-attention projection for the whole tile on the MXU:
        # (TB*N, L) bf16 @ (L, 2D) bf16 -> f32
        vu = jnp.dot(h2, wvu_ref[...],
                     preferred_element_type=jnp.float32) + bvu_ref[...]
        gate = jnp.tanh(vu[:, :d]) * jax.nn.sigmoid(vu[:, d:])          # (TB*N, D) f32
        gate3 = gate.astype(jnp.bfloat16).reshape(tb, n, d)             # (TB, N, D) bf16

        # Batched attention logits, directly in (TB, C, N) lane-dense layout.
        watt_b = jnp.broadcast_to(watt_ref[...], (tb, c, d))            # bf16
        logits = jax.lax.dot_general(
            watt_b, gate3, (((2,), (2,)), ((0,), (0,))),
            preferred_element_type=jnp.float32) + batt_ref[...]         # (TB, C, N) f32

        # Batched softmax over instances (last axis == lanes).
        m = jnp.max(logits, axis=-1, keepdims=True)
        e = jnp.exp(logits - m)
        s = jnp.sum(e, axis=-1, keepdims=True)
        attn = e * pl.reciprocal(s, approx=True)                        # (TB, C, N) f32

        # Single lane-dense store of the attention map for the whole tile.
        a_ref[...] = attn.astype(a_ref.dtype)

        # Batched pooling M = A @ H on the bf16 MXU (f32 accumulation), then
        # per-class linear classifiers (bias=False per spec).
        m_bag = jax.lax.dot_general(
            attn.astype(jnp.bfloat16), h3, (((2,), (1,)), ((0,), (0,))),
            preferred_element_type=jnp.float32)                         # (TB, C, L) f32
        y = jnp.sum(m_bag * wcls_ref[...][None, :, :], axis=-1,
                    keepdims=True)                                      # (TB, C, 1)
        y_ref[...] = y.astype(y_ref.dtype)

    return kernel


# ---------------------------------------------------------------------------
# Host wrapper
# ---------------------------------------------------------------------------

def mil_attention_forward(H, params, bag_tile=None):
    """H: (bs, N, L) float32 -> (Y: (bs, C), A_all: (bs, C, N))."""
    bs, n, l = H.shape
    c, d = params["watt"].shape

    if bag_tile is None:
        bag_tile = _pick_bag_tile(bs, n, l, d, c)
    assert bs % bag_tile == 0
    grid = bs // bag_tile

    # Fused V/U gate weight and bias; bf16 weights for a single MXU pass.
    wvu = jnp.concatenate([params["wv"], params["wu"]], axis=1).astype(jnp.bfloat16)
    bvu = jnp.concatenate([params["bv"], params["bu"]], axis=1).astype(jnp.float32)  # (1, 2D)
    watt = params["watt"].astype(jnp.bfloat16)                 # (C, D)
    batt = params["batt"].reshape(c, 1).astype(jnp.float32)    # (C, 1)
    wcls = params["wcls"].astype(jnp.float32)                  # (C, L)
    h_b = H.astype(jnp.bfloat16)                               # (bs, N, L)

    kernel = _make_mil_kernel(bag_tile, n, d, c)

    y, a = pl.pallas_call(
        kernel,
        out_shape=(
            jax.ShapeDtypeStruct((bs, c, 1), jnp.float32),
            jax.ShapeDtypeStruct((bs, c, n), jnp.float32),
        ),
        grid_spec=pltpu.PrefetchScalarGridSpec(
            num_scalar_prefetch=0,
            grid=(grid,),
            in_specs=[
                pl.BlockSpec((bag_tile, n, l), lambda i: (i, 0, 0)),   # H tile (TB bags)
                pl.BlockSpec((l, 2 * d), lambda i: (0, 0)),            # fused Wvu
                pl.BlockSpec((1, 2 * d), lambda i: (0, 0)),            # fused bvu
                pl.BlockSpec((c, d), lambda i: (0, 0)),                # Watt
                pl.BlockSpec((c, 1), lambda i: (0, 0)),                # batt
                pl.BlockSpec((c, l), lambda i: (0, 0)),                # Wcls
            ],
            out_specs=[
                pl.BlockSpec((bag_tile, c, 1), lambda i: (i, 0, 0)),   # Y
                pl.BlockSpec((bag_tile, c, n), lambda i: (i, 0, 0)),   # A (C, N) lane-dense
            ],
        ),
        compiler_params=pltpu.CompilerParams(
            dimension_semantics=("parallel",),
            vmem_limit_bytes=_vmem_limit_bytes()),
    )(h_b, wvu, bvu, watt, batt, wcls)

    return y[:, :, 0], a


def feature_extractor_standin(x, w_proj, b_proj):
    """Stand-in for the ResNet18 backbone: GAP over spatial + linear proj to L.
    x: (bs, N, ch, w, h) -> H: (bs, N, L)"""
    bs, n, ch, w, h = x.shape
    pooled = jnp.mean(x.reshape(bs * n, ch, w * h), axis=-1)   # (bs*N, ch)
    H = pooled @ w_proj + b_proj                               # (bs*N, L)
    # feature_dropout: identity (eval mode)
    return H.reshape(bs, n, L)


def model_forward(x, params):
    H = feature_extractor_standin(x, params["wproj"], params["bproj"])
    return mil_attention_forward(H, params)


def reference_forward(H, p):
    """Pure-JAX reference of the MIL attention (matches torch forward semantics)."""
    hi = jax.lax.Precision.HIGHEST
    A_V = jnp.tanh(jnp.einsum("bnl,ld->bnd", H, p["wv"], precision=hi) + p["bv"])
    A_U = jax.nn.sigmoid(jnp.einsum("bnl,ld->bnd", H, p["wu"], precision=hi) + p["bu"])
    G = A_V * A_U
    logits = jnp.einsum("bnd,cd->bnc", G, p["watt"], precision=hi) + p["batt"]
    A = jax.nn.softmax(logits, axis=1)             # softmax over instances
    A_all = jnp.transpose(A, (0, 2, 1))            # (bs, C, N)
    M = jnp.einsum("bcn,bnl->bcl", A_all, H, precision=hi)
    Y = jnp.einsum("bcl,cl->bc", M, p["wcls"], precision=hi)
    return Y, A_all


def init_params(key, ch):
    ks = jax.random.split(key, 9)
    f32 = jnp.float32
    return {
        "wproj": (jax.random.normal(ks[0], (ch, L), f32) * 0.1),
        "bproj": (jax.random.normal(ks[1], (L,), f32) * 0.01),
        "wv":    (jax.random.normal(ks[2], (L, D), f32) / jnp.sqrt(L)).astype(f32),
        "bv":    (jax.random.normal(ks[3], (1, D), f32) * 0.01),
        "wu":    (jax.random.normal(ks[4], (L, D), f32) / jnp.sqrt(L)).astype(f32),
        "bu":    (jax.random.normal(ks[5], (1, D), f32) * 0.01),
        "watt":  (jax.random.normal(ks[6], (NUM_CLASSES, D), f32) / jnp.sqrt(D)).astype(f32),
        "batt":  (jax.random.normal(ks[7], (1, NUM_CLASSES), f32) * 0.01),
        "wcls":  (jax.random.normal(ks[8], (NUM_CLASSES, L), f32) / jnp.sqrt(L)).astype(f32),
    }


if __name__ == "__main__":
    bs, N, CH, W, Hh = 4, 8, 3, 16, 16   # bag_tile auto-picks 2 -> grid of 2 steps

    key = jax.random.PRNGKey(0)
    k_param, k_x = jax.random.split(key)
    params = init_params(k_param, CH)
    x = jax.random.normal(k_x, (bs, N, CH, W, Hh), jnp.float32)

    Y, A_all = model_forward(x, params)
    Y = jax.block_until_ready(Y)
    A_all = jax.block_until_ready(A_all)

    assert Y.shape == (bs, NUM_CLASSES)
    assert A_all.shape == (bs, NUM_CLASSES, N)

    # Reference check of the attention head. The kernel rounds H and the gate /
    # attention weights to bf16, so apply the same rounding to the reference
    # inputs to test the kernel math itself at a tight tolerance.
    H_feat = feature_extractor_standin(x, params["wproj"], params["bproj"])
    Hr = H_feat.astype(jnp.bfloat16).astype(jnp.float32)
    pr = dict(params)
    pr["wv"] = params["wv"].astype(jnp.bfloat16).astype(jnp.float32)
    pr["wu"] = params["wu"].astype(jnp.bfloat16).astype(jnp.float32)
    pr["watt"] = params["watt"].astype(jnp.bfloat16).astype(jnp.float32)
    Y_ref, A_ref = reference_forward(Hr, pr)

    assert jnp.allclose(Y, Y_ref, atol=1e-2, rtol=1e-2)
    assert jnp.allclose(A_all, A_ref, atol=1e-2, rtol=1e-2)

    print("KERNEL_OK")
</pallas_src>

<mosaic_0001>
module attributes {stable_mosaic.version = 11 : i64} {
  func.func @kernel(%arg0: i32, %arg1: memref<2x8x512xbf16, #tpu.memory_space<vmem>>, %arg2: memref<512x256xbf16, #tpu.memory_space<vmem>>, %arg3: memref<1x256xf32, #tpu.memory_space<vmem>>, %arg4: memref<2x128xbf16, #tpu.memory_space<vmem>>, %arg5: memref<2x1xf32, #tpu.memory_space<vmem>>, %arg6: memref<2x512xf32, #tpu.memory_space<vmem>>, %arg7: memref<2x2x1xf32, #tpu.memory_space<vmem>>, %arg8: memref<2x2x8xf32, #tpu.memory_space<vmem>>) attributes {dimension_semantics = [#tpu.dimension_semantics<parallel>], iteration_bounds = array<i64: 2>, scalar_prefetch = 0 : i64, scratch_operands = 0 : i64, tpu.core_type = #tpu.core_type<tc>, window_params = [{transform_indices = @transform_0, window_bounds = array<i64: 2, 8, 512>}, {pipeline_mode = #tpu.pipeline_mode<synchronous>, transform_indices = @transform_1, window_bounds = array<i64: 512, 256>}, {pipeline_mode = #tpu.pipeline_mode<synchronous>, transform_indices = @transform_2, window_bounds = array<i64: 1, 256>}, {pipeline_mode = #tpu.pipeline_mode<synchronous>, transform_indices = @transform_3, window_bounds = array<i64: 2, 128>}, {pipeline_mode = #tpu.pipeline_mode<synchronous>, transform_indices = @transform_4, window_bounds = array<i64: 2, 1>}, {pipeline_mode = #tpu.pipeline_mode<synchronous>, transform_indices = @transform_5, window_bounds = array<i64: 2, 512>}, {transform_indices = @transform_6, window_bounds = array<i64: 2, 2, 1>}, {transform_indices = @transform_7, window_bounds = array<i64: 2, 2, 8>}]} {
    %c0 = arith.constant 0 : index
    %c0_0 = arith.constant 0 : index
    %c0_1 = arith.constant 0 : index
    %0 = vector.load %arg1[%c0, %c0_0, %c0_1] : memref<2x8x512xbf16, #tpu.memory_space<vmem>>, vector<2x8x512xbf16>
    %1 = vector.shape_cast %0 : vector<2x8x512xbf16> to vector<16x512xbf16>
    %c0_2 = arith.constant 0 : index
    %c0_3 = arith.constant 0 : index
    %2 = vector.load %arg2[%c0_2, %c0_3] : memref<512x256xbf16, #tpu.memory_space<vmem>>, vector<512x256xbf16>
    %cst = arith.constant dense<0.000000e+00> : vector<16x256xf32>
    %3 = tpu.matmul %1, %2, %cst {dimension_numbers = #tpu.dot_dimension_numbers<[1], [0], [0], [1], [0, 0, 1, 1], [], []>} : vector<16x512xbf16>, vector<512x256xbf16>, vector<16x256xf32> -> vector<16x256xf32>
    %c0_4 = arith.constant 0 : index
    %c0_5 = arith.constant 0 : index
    %4 = vector.load %arg3[%c0_4, %c0_5] : memref<1x256xf32, #tpu.memory_space<vmem>>, vector<1x256xf32>
    %5 = vector.broadcast %4 : vector<1x256xf32> to vector<16x256xf32>
    %6 = arith.addf %3, %5 : vector<16x256xf32>
    %7 = vector.extract_strided_slice %6 {offsets = [0, 0], sizes = [16, 128], strides = [1, 1]} : vector<16x256xf32> to vector<16x128xf32>
    %8 = math.tanh %7 : vector<16x128xf32>
    %9 = vector.extract_strided_slice %6 {offsets = [0, 128], sizes = [16, 128], strides = [1, 1]} : vector<16x256xf32> to vector<16x128xf32>
    %10 = arith.negf %9 : vector<16x128xf32>
    %11 = math.exp %10 : vector<16x128xf32>
    %cst_6 = arith.constant 1.000000e+00 : f32
    %12 = vector.broadcast %cst_6 : f32 to vector<16x128xf32>
    %13 = arith.addf %12, %11 : vector<16x128xf32>
    %14 = arith.divf %12, %13 : vector<16x128xf32>
    %15 = arith.mulf %8, %14 : vector<16x128xf32>
    %16 = arith.truncf %15 : vector<16x128xf32> to vector<16x128xbf16>
    %17 = vector.shape_cast %16 : vector<16x128xbf16> to vector<2x8x128xbf16>
    %c0_7 = arith.constant 0 : index
    %c0_8 = arith.constant 0 : index
    %18 = vector.load %arg4[%c0_7, %c0_8] : memref<2x128xbf16, #tpu.memory_space<vmem>>, vector<2x128xbf16>
    %19 = vector.shape_cast %18 : vector<2x128xbf16> to vector<1x2x128xbf16>
    %20 = vector.broadcast %19 : vector<1x2x128xbf16> to vector<2x2x128xbf16>
    %cst_9 = arith.constant dense<0.000000e+00> : vector<2x2x8xf32>
    %21 = tpu.matmul %20, %17, %cst_9 {dimension_numbers = #tpu.dot_dimension_numbers<[2], [2], [1], [1], [0, 0, 0, 1, 1, 1], [0], [0]>} : vector<2x2x128xbf16>, vector<2x8x128xbf16>, vector<2x2x8xf32> -> vector<2x2x8xf32>
    %c0_10 = arith.constant 0 : index
    %c0_11 = arith.constant 0 : index
    %22 = vector.load %arg5[%c0_10, %c0_11] : memref<2x1xf32, #tpu.memory_space<vmem>>, vector<2x1xf32>
    %23 = vector.shape_cast %22 : vector<2x1xf32> to vector<1x2x1xf32>
    %24 = vector.broadcast %23 : vector<1x2x1xf32> to vector<2x2x8xf32>
    %25 = arith.addf %21, %24 : vector<2x2x8xf32>
    %cst_12 = arith.constant dense<0xFF800000> : vector<2x2xf32>
    %26 = vector.multi_reduction <maximumf>, %25, %cst_12 [2] : vector<2x2x8xf32> to vector<2x2xf32>
    %27 = vector.shape_cast %26 : vector<2x2xf32> to vector<2x2x1xf32>
    %28 = vector.broadcast %27 : vector<2x2x1xf32> to vector<2x2x8xf32>
    %29 = arith.subf %25, %28 : vector<2x2x8xf32>
    %30 = math.exp %29 : vector<2x2x8xf32>
    %cst_13 = arith.constant dense<0.000000e+00> : vector<2x2xf32>
    %31 = vector.multi_reduction <add>, %30, %cst_13 [2] : vector<2x2x8xf32> to vector<2x2xf32>
    %32 = vector.shape_cast %31 : vector<2x2xf32> to vector<2x2x1xf32>
    %33 = tpu.reciprocal %32 {approx = true} : vector<2x2x1xf32> -> vector<2x2x1xf32>
    %34 = vector.broadcast %33 : vector<2x2x1xf32> to vector<2x2x8xf32>
    %35 = arith.mulf %30, %34 : vector<2x2x8xf32>
    %c0_14 = arith.constant 0 : index
    %c0_15 = arith.constant 0 : index
    %c0_16 = arith.constant 0 : index
    %36 = vector.load %arg8[%c0_14, %c0_15, %c0_16] : memref<2x2x8xf32, #tpu.memory_space<vmem>>, vector<2x2x8xf32>
    tpu.vector_store %arg8[%c0_14, %c0_15, %c0_16], %35 {strides = array<i32>} : memref<2x2x8xf32, #tpu.memory_space<vmem>>, vector<2x2x8xf32>,
    %37 = arith.truncf %35 : vector<2x2x8xf32> to vector<2x2x8xbf16>
    %cst_17 = arith.constant dense<0.000000e+00> : vector<2x2x512xf32>
    %38 = tpu.matmul %37, %0, %cst_17 {dimension_numbers = #tpu.dot_dimension_numbers<[2], [1], [1], [2], [0, 0, 0, 1, 1, 2], [0], [0]>} : vector<2x2x8xbf16>, vector<2x8x512xbf16>, vector<2x2x512xf32> -> vector<2x2x512xf32>
    %c0_18 = arith.constant 0 : index
    %c0_19 = arith.constant 0 : index
    %39 = vector.load %arg6[%c0_18, %c0_19] : memref<2x512xf32, #tpu.memory_space<vmem>>, vector<2x512xf32>
    %40 = vector.shape_cast %39 : vector<2x512xf32> to vector<1x2x512xf32>
    %41 = vector.broadcast %40 : vector<1x2x512xf32> to vector<2x2x512xf32>
    %42 = arith.mulf %38, %41 : vector<2x2x512xf32>
    %cst_20 = arith.constant dense<0.000000e+00> : vector<2x2xf32>
    %43 = vector.multi_reduction <add>, %42, %cst_20 [2] : vector<2x2x512xf32> to vector<2x2xf32>
    %44 = vector.shape_cast %43 : vector<2x2xf32> to vector<2x2x1xf32>
    %c0_21 = arith.constant 0 : index
    %c0_22 = arith.constant 0 : index
    %c0_23 = arith.constant 0 : index
    %45 = vector.load %arg7[%c0_21, %c0_22, %c0_23] : memref<2x2x1xf32, #tpu.memory_space<vmem>>, vector<2x2x1xf32>
    tpu.vector_store %arg7[%c0_21, %c0_22, %c0_23], %44 {strides = array<i32>} : memref<2x2x1xf32, #tpu.memory_space<vmem>>, vector<2x2x1xf32>,
    return
  }
  func.func @transform_0(%arg0: i32) -> (i32, i32, i32) {
    %c0_i32 = arith.constant 0 : i32
    %c0_i32_0 = arith.constant 0 : i32
    %c0_i32_1 = arith.constant 0 : i32
    return %arg0, %c0_i32, %c0_i32_0 : i32, i32, i32
  }
  func.func @transform_1(%arg0: i32) -> (i32, i32) {
    %c0_i32 = arith.constant 0 : i32
    %c0_i32_0 = arith.constant 0 : i32
    %c0_i32_1 = arith.constant 0 : i32
    return %c0_i32, %c0_i32_0 : i32, i32
  }
  func.func @transform_2(%arg0: i32) -> (i32, i32) {
    %c0_i32 = arith.constant 0 : i32
    %c0_i32_0 = arith.constant 0 : i32
    %c0_i32_1 = arith.constant 0 : i32
    return %c0_i32, %c0_i32_0 : i32, i32
  }
  func.func @transform_3(%arg0: i32) -> (i32, i32) {
    %c0_i32 = arith.constant 0 : i32
    %c0_i32_0 = arith.constant 0 : i32
    %c0_i32_1 = arith.constant 0 : i32
    return %c0_i32, %c0_i32_0 : i32, i32
  }
  func.func @transform_4(%arg0: i32) -> (i32, i32) {
    %c0_i32 = arith.constant 0 : i32
    %c0_i32_0 = arith.constant 0 : i32
    %c0_i32_1 = arith.constant 0 : i32
    return %c0_i32, %c0_i32_0 : i32, i32
  }
  func.func @transform_5(%arg0: i32) -> (i32, i32) {
    %c0_i32 = arith.constant 0 : i32
    %c0_i32_0 = arith.constant 0 : i32
    %c0_i32_1 = arith.constant 0 : i32
    return %c0_i32, %c0_i32_0 : i32, i32
  }
  func.func @transform_6(%arg0: i32) -> (i32, i32, i32) {
    %c0_i32 = arith.constant 0 : i32
    %c0_i32_0 = arith.constant 0 : i32
    %c0_i32_1 = arith.constant 0 : i32
    return %arg0, %c0_i32, %c0_i32_0 : i32, i32, i32
  }
  func.func @transform_7(%arg0: i32) -> (i32, i32, i32) {
    %c0_i32 = arith.constant 0 : i32
    %c0_i32_0 = arith.constant 0 : i32
    %c0_i32_1 = arith.constant 0 : i32
    return %arg0, %c0_i32, %c0_i32_0 : i32, i32, i32
  }
}

</mosaic_0001>

<llo_original>
// kernel: tpu_custom_call.1
$region0: #{tpu_custom_call.1}
  #allocation0 [shape = 'u32[]', space=smem, size = 0x4, offset = 0x4, fixed_abs, tag = 'smem constant byte address 0x4 - core index']
  #allocation1 [shape = 'u32[72,128]{1,0:T(1,128)}', space=vmem, size = 0x9000, scoped, tag = 'internal scratch']
  %s0 = inlined_call_operand.hbm [shape: bf16[4,8,512], index: 0, kind: input, shape index: {}]
  %s1 = inlined_call_operand.hbm [shape: bf16[512,256], index: 1, kind: input, shape index: {}]
  %s2 = inlined_call_operand.vmem [shape: f32[1,256], index: 2, kind: input, shape index: {}]
  %s3 = inlined_call_operand.vmem [shape: bf16[2,128], index: 3, kind: input, shape index: {}]
  %s4 = inlined_call_operand.vmem [shape: f32[2,1], index: 4, kind: input, shape index: {}]
  %s5 = inlined_call_operand.hbm [shape: f32[2,512], index: 5, kind: input, shape index: {}]
  %s6 = inlined_call_operand.vmem [shape: f32[4,2,1], index: 6, kind: output, shape index: {0}]
  %s7 = inlined_call_operand.hbm [shape: f32[4,2,8], index: 7, kind: output, shape index: {1}]
  %8 = xla_tuple %s6, %s7
  %s9 = sld [smem:[#allocation0]]
  $region77: #{tpu_custom_call.1} parent=0
    _
  %s11 = ssub.s32 1, %s9
  %s12 = scalar_select 0, %s11, %s9
  $region1: #{tpu_custom_call.1} parent=0
    #allocation2 [shape = 'u8[32768]{0}', space=vmem, size = 0x8000, scoped, tag = 'input window, operand 0']
    #allocation3 [shape = 's32[2]{0}', space=sflag, size = 0x8, scoped, tag = 'scoped memory for tpu_custom_call.1']
    #allocation4 [shape = 's32[2]{0}', space=sflag, size = 0x8, scoped, tag = 'scoped memory for tpu_custom_call.1']
    #allocation5 [shape = 'u8[262144]{0}', space=vmem, size = 0x40000, scoped, tag = 'input window, operand 1, single buffered']
    #allocation6 [shape = 's32[1]{0}', space=sflag, size = 0x4, scoped, tag = 'scoped memory for tpu_custom_call.1']
    #allocation7 [shape = 'u8[4096]{0}', space=vmem, size = 0x1000, scoped, tag = 'input window, operand 5, single buffered']
    #allocation8 [shape = 'u8[4096]{0}', space=vmem, size = 0x1000, scoped, tag = 'output window, operand 1']
    %13 = vsyncpa [#allocation3], 0
    %s14 = scalar_lea.sflag [#allocation3], 1
    %15 = vsyncpa %s14, 0
    %16 = vsyncpa [#allocation6], 0
    %17 = vsyncpa [#allocation4], 0
    %s18 = scalar_lea.sflag [#allocation4], 1
    %19 = vsyncpa %s18, 0
    loop: start=0, step=1, limit=4
    $region2: #{tpu_custom_call.1} parent=1 // loop_pre_header
      _
    $region3: #{tpu_custom_call.1} parent=1 // loop_header
      %s21 = sphi 0, %s25
      %p22 = scmp.ge.s32.totalorder %s21, 4
      %s31 = sphi 0, %s33
      %s34 = sphi 0, %s31
      %s35 = sphi 0, %s34
      %s51 = sphi 0, %s35
      %s55 = sphi 0, %s55
      %s57 = sphi 0, %s55
      %s58 = sphi 0, %s57
      %s72 = sphi 0, %s58
      %s76 = sphi 0, %s76
      %s78 = sphi 0, %s76
      %s79 = sphi 0, %s78
      %s93 = sphi 0, %s79
      %s97 = sphi 0, %s97
      %s99 = sphi 0, %s97
      %s100 = sphi 0, %s99
      %s114 = sphi 0, %s100
      %s118 = sphi 0, %s118
      %s120 = sphi 0, %s118
      %s121 = sphi 0, %s120
      %s135 = sphi 0, %s121
      %s139 = sphi 0, %s139
      %s141 = sphi 0, %s139
      %s142 = sphi 0, %s141
      %s156 = sphi 0, %s142
      %s162 = sphi 0, %s164
      %s165 = sphi 0, %s162
      %s166 = sphi 0, %s165
      %s182 = sphi 0, %s166
      %s188 = sphi 0, %s190
      %s191 = sphi 0, %s188
      %s192 = sphi 0, %s191
      %s208 = sphi 0, %s192
    $region4: #{tpu_custom_call.1} parent=1 // loop_header_branch
      %24 = sbr.rel (%p22) target = $region8
    $region5: #{tpu_custom_call.1} parent=1 // loop_body
      %s26 = ssub.s32 %s21, 1
      %s27 = ssub.s32 %s21, 2
      %s28 = sadd.s32 %s21, 1
      %s29 = ssub.s32 %s21, %s28
      %p30 = scmp.eq.s32.totalorder %s29, 0
      %s32 = sadd.s32 %s31, 1
      %s33 = scalar_select %p30, %s31, %s32
      %p36 = pneg %p30
      %p37 = scmp.eq.s32.totalorder %s21, 1
      %p38 = por %p36, %p37
      %p39 = scmp.ne.s32.totalorder %s31, %s34
      %p40 = scmp.eq.s32.totalorder %s21, 0
      %p41 = por %p39, %p40
      %p42 = scmp.ne.s32.totalorder %s31, %s34
      %p43 = scmp.eq.s32.totalorder %s26, 1
      %p44 = por %p42, %p43
      %p45 = scmp.ne.s32.totalorder %s34, %s35
      %p46 = scmp.eq.s32.totalorder %s26, 0
      %p47 = por %p45, %p46
      %p48 = scmp.ne.s32.totalorder %s34, %s35
      %p49 = scmp.eq.s32.totalorder %s27, 1
      %p50 = por %p48, %p49
      %p52 = scmp.ne.s32.totalorder %s35, %s51
      %p53 = scmp.eq.s32.totalorder %s27, 0
      %p54 = por %p52, %p53
      %s56 = sadd.s32 %s55, 1
      %p59 = scmp.eq.s32.totalorder %s21, 1
      %p60 = scmp.ne.s32.totalorder %s55, %s57
      %p61 = scmp.eq.s32.totalorder %s21, 0
      %p62 = por %p60, %p61
      %p63 = scmp.ne.s32.totalorder %s55, %s57
      %p64 = scmp.eq.s32.totalorder %s26, 1
      %p65 = por %p63, %p64
      %p66 = scmp.ne.s32.totalorder %s57, %s58
      %p67 = scmp.eq.s32.totalorder %s26, 0
      %p68 = por %p66, %p67
      %p69 = scmp.ne.s32.totalorder %s57, %s58
      %p70 = scmp.eq.s32.totalorder %s27, 1
      %p71 = por %p69, %p70
      %p73 = scmp.ne.s32.totalorder %s58, %s72
      %p74 = scmp.eq.s32.totalorder %s27, 0
      %p75 = por %p73, %p74
      %s77 = sadd.s32 %s76, 1
      %p80 = scmp.eq.s32.totalorder %s21, 1
      %p81 = scmp.ne.s32.totalorder %s76, %s78
      %p82 = scmp.eq.s32.totalorder %s21, 0
      %p83 = por %p81, %p82
      %p84 = scmp.ne.s32.totalorder %s76, %s78
      %p85 = scmp.eq.s32.totalorder %s26, 1
      %p86 = por %p84, %p85
      %p87 = scmp.ne.s32.totalorder %s78, %s79
      %p88 = scmp.eq.s32.totalorder %s26, 0
      %p89 = por %p87, %p88
      %p90 = scmp.ne.s32.totalorder %s78, %s79
      %p91 = scmp.eq.s32.totalorder %s27, 1
      %p92 = por %p90, %p91
      %p94 = scmp.ne.s32.totalorder %s79, %s93
      %p95 = scmp.eq.s32.totalorder %s27, 0
      %p96 = por %p94, %p95
      %s98 = sadd.s32 %s97, 1
      %p101 = scmp.eq.s32.totalorder %s21, 1
      %p102 = scmp.ne.s32.totalorder %s97, %s99
      %p103 = scmp.eq.s32.totalorder %s21, 0
      %p104 = por %p102, %p103
      %p105 = scmp.ne.s32.totalorder %s97, %s99
      %p106 = scmp.eq.s32.totalorder %s26, 1
      %p107 = por %p105, %p106
      %p108 = scmp.ne.s32.totalorder %s99, %s100
      %p109 = scmp.eq.s32.totalorder %s26, 0
      %p110 = por %p108, %p109
      %p111 = scmp.ne.s32.totalorder %s99, %s100
      %p112 = scmp.eq.s32.totalorder %s27, 1
      %p113 = por %p111, %p112
      %p115 = scmp.ne.s32.totalorder %s100, %s114
      %p116 = scmp.eq.s32.totalorder %s27, 0
      %p117 = por %p115, %p116
      %s119 = sadd.s32 %s118, 1
      %p122 = scmp.eq.s32.totalorder %s21, 1
      %p123 = scmp.ne.s32.totalorder %s118, %s120
      %p124 = scmp.eq.s32.totalorder %s21, 0
      %p125 = por %p123, %p124
      %p126 = scmp.ne.s32.totalorder %s118, %s120
      %p127 = scmp.eq.s32.totalorder %s26, 1
      %p128 = por %p126, %p127
      %p129 = scmp.ne.s32.totalorder %s120, %s121
      %p130 = scmp.eq.s32.totalorder %s26, 0
      %p131 = por %p129, %p130
      %p132 = scmp.ne.s32.totalorder %s120, %s121
      %p133 = scmp.eq.s32.totalorder %s27, 1
      %p134 = por %p132, %p133
      %p136 = scmp.ne.s32.totalorder %s121, %s135
      %p137 = scmp.eq.s32.totalorder %s27, 0
      %p138 = por %p136, %p137
      %s140 = sadd.s32 %s139, 1
      %p143 = scmp.eq.s32.totalorder %s21, 1
      %p144 = scmp.ne.s32.totalorder %s139, %s141
      %p145 = scmp.eq.s32.totalorder %s21, 0
      %p146 = por %p144, %p145
      %p147 = scmp.ne.s32.totalorder %s139, %s141
      %p148 = scmp.eq.s32.totalorder %s26, 1
      %p149 = por %p147, %p148
      %p150 = scmp.ne.s32.totalorder %s141, %s142
      %p151 = scmp.eq.s32.totalorder %s26, 0
      %p152 = por %p150, %p151
      %p153 = scmp.ne.s32.totalorder %s141, %s142
      %p154 = scmp.eq.s32.totalorder %s27, 1
      %p155 = por %p153, %p154
      %p157 = scmp.ne.s32.totalorder %s142, %s156
      %p158 = scmp.eq.s32.totalorder %s27, 0
      %p159 = por %p157, %p158
      %s160 = ssub.s32 %s21, %s28
      %p161 = scmp.eq.s32.totalorder %s160, 0
      %s163 = sadd.s32 %s162, 1
      %s164 = scalar_select %p161, %s162, %s163
      %p167 = pneg %p161
      %p168 = scmp.eq.s32.totalorder %s21, 1
      %p169 = por %p167, %p168
      %p170 = scmp.ne.s32.totalorder %s162, %s165
      %p171 = scmp.eq.s32.totalorder %s21, 0
      %p172 = por %p170, %p171
      %p173 = scmp.ne.s32.totalorder %s162, %s165
      %p174 = scmp.eq.s32.totalorder %s26, 1
      %p175 = por %p173, %p174
      %p176 = scmp.ne.s32.totalorder %s165, %s166
      %p177 = scmp.eq.s32.totalorder %s26, 0
      %p178 = por %p176, %p177
      %p179 = scmp.ne.s32.totalorder %s165, %s166
      %p180 = scmp.eq.s32.totalorder %s27, 1
      %p181 = por %p179, %p180
      %p183 = scmp.ne.s32.totalorder %s166, %s182
      %p184 = scmp.eq.s32.totalorder %s27, 0
      %p185 = por %p183, %p184
      %s186 = ssub.s32 %s21, %s28
      %p187 = scmp.eq.s32.totalorder %s186, 0
      %s189 = sadd.s32 %s188, 1
      %s190 = scalar_select %p187, %s188, %s189
      %p193 = pneg %p187
      %p194 = scmp.eq.s32.totalorder %s21, 1
      %p195 = por %p193, %p194
      %p196 = scmp.ne.s32.totalorder %s188, %s191
      %p197 = scmp.eq.s32.totalorder %s21, 0
      %p198 = por %p196, %p197
      %p199 = scmp.ne.s32.totalorder %s188, %s191
      %p200 = scmp.eq.s32.totalorder %s26, 1
      %p201 = por %p199, %p200
      %p202 = scmp.ne.s32.totalorder %s191, %s192
      %p203 = scmp.eq.s32.totalorder %s26, 0
      %p204 = por %p202, %p203
      %p205 = scmp.ne.s32.totalorder %s191, %s192
      %p206 = scmp.eq.s32.totalorder %s27, 1
      %p207 = por %p205, %p206
      %p209 = scmp.ne.s32.totalorder %s192, %s208
      %p210 = scmp.eq.s32.totalorder %s27, 0
      %p211 = por %p209, %p210
      %p212 = scmp.le.s32.totalorder 1, %s21
      %p213 = scmp.lt.s32.totalorder %s21, 3
      %p214 = pnand %p212, %p213
      %p215 = pneg %p214
      // Predicated region
      $region9: #{tpu_custom_call.1} parent=5 // pred_check
        _
      $region10: #{tpu_custom_call.1} parent=5 // pred_check_branch
        %217 = sbr.rel (%p214) target = $region12
      $region11: #{tpu_custom_call.1} parent=5 // pred_region
        %s218 = ssub.s32 %s21, 1
        // Predicated region
        $region13: #{tpu_custom_call.1} parent=11 // pred_check
          %p219 = pneg %p68
        $region14: #{tpu_custom_call.1} parent=11 // pred_check_branch
          %221 = sbr.rel (%p219) target = $region16
        $region15: #{tpu_custom_call.1} parent=11 // pred_region
          %223 = vsyncadd [#allocation6], 0
          %s224 = sshll.u32 %s1, 4
          %s225 = int_to_ptr.hbm [resolvable:$true] %s224
          %s226 = sshll.u32 [#allocation5], 4
          %s227 = int_to_ptr.vmem [resolvable:$true] %s226
          %232 = dma.hbm_to_vmem [thread:$0]  %s225, 8192, %s227, [#allocation6], 128, 128, 8
        $region16: #{tpu_custom_call.1} parent=11 // pred_fallthru
          _
        // Predicated region
        $region17: #{tpu_custom_call.1} parent=11 // pred_check
          %p233 = pneg %p89
        $region18: #{tpu_custom_call.1} parent=11 // pred_check_branch
          %235 = sbr.rel (%p233) target = $region20
        $region19: #{tpu_custom_call.1} parent=11 // pred_region
          _
        $region20: #{tpu_custom_call.1} parent=11 // pred_fallthru
          _
        // Predicated region
        $region21: #{tpu_custom_call.1} parent=11 // pred_check
          %p236 = pneg %p110
        $region22: #{tpu_custom_call.1} parent=11 // pred_check_branch
          %238 = sbr.rel (%p236) target = $region24
        $region23: #{tpu_custom_call.1} parent=11 // pred_region
          _
        $region24: #{tpu_custom_call.1} parent=11 // pred_fallthru
          _
        // Predicated region
        $region25: #{tpu_custom_call.1} parent=11 // pred_check
          %p239 = pneg %p131
        $region26: #{tpu_custom_call.1} parent=11 // pred_check_branch
          %241 = sbr.rel (%p239) target = $region28
        $region27: #{tpu_custom_call.1} parent=11 // pred_region
          _
        $region28: #{tpu_custom_call.1} parent=11 // pred_fallthru
          _
        // Predicated region
        $region29: #{tpu_custom_call.1} parent=11 // pred_check
          %p242 = pneg %p152
        $region30: #{tpu_custom_call.1} parent=11 // pred_check_branch
          %244 = sbr.rel (%p242) target = $region32
        $region31: #{tpu_custom_call.1} parent=11 // pred_region
          %246 = vsyncadd [#allocation6], 0
          %s248 = sshll.u32 %s5, 4
          %s249 = int_to_ptr.hbm [resolvable:$true] %s248
          %s250 = sshll.u32 [#allocation7], 4
          %s251 = int_to_ptr.vmem [resolvable:$true] %s250
          %253 = dma.hbm_to_vmem [thread:$0]  %s249, 128, %s251, [#allocation6]
        $region32: #{tpu_custom_call.1} parent=11 // pred_fallthru
          _
      $region12: #{tpu_custom_call.1} parent=5 // pred_fallthru
        _
      %p254 = scmp.lt.s32.totalorder %s21, 2
      // Predicated region
      $region33: #{tpu_custom_call.1} parent=5 // pred_check
        %p255 = pneg %p254
      $region34: #{tpu_custom_call.1} parent=5 // pred_check_branch
        %257 = sbr.rel (%p255) target = $region36
      $region35: #{tpu_custom_call.1} parent=5 // pred_region
        // Predicated region
        $region37: #{tpu_custom_call.1} parent=35 // pred_check
          %p258 = pneg %p41
        $region38: #{tpu_custom_call.1} parent=35 // pred_check_branch
          %260 = sbr.rel (%p258) target = $region40
        $region39: #{tpu_custom_call.1} parent=35 // pred_region
          %s261 = sand.u32 %s31, 1
          %s262 = scalar_lea.sflag [#allocation3], %s261
          %s263 = sand.u32 %s31, 1
          %s264 = smul.addr %s263, 32
          %s265 = scalar_lea.vmem [#allocation2], %s264
          %s266 = smul.u32 2, %s21
          %268 = vsyncadd %s262, 0
          %s269 = smul.addr %s266, 4
          %s270 = smul.addr %s269, 4
          %s271 = scalar_lea.hbm %s0, %s270
          %s272 = sshll.u32 %s271, 4
          %s273 = int_to_ptr.hbm [resolvable:$true] %s272
          %s274 = sshll.u32 %s265, 4
          %s275 = int_to_ptr.vmem [resolvable:$true] %s274
          %280 = dma.hbm_to_vmem [thread:$0]  %s273, 512, %s275, %s262, 256, 256, 16
        $region40: #{tpu_custom_call.1} parent=35 // pred_fallthru
          _
      $region36: #{tpu_custom_call.1} parent=5 // pred_fallthru
        _
      %p281 = scmp.le.s32.totalorder 1, %s21
      %p282 = scmp.lt.s32.totalorder %s21, 3
      %p283 = pnand %p281, %p282
      %p284 = pneg %p283
      // Predicated region
      $region41: #{tpu_custom_call.1} parent=5 // pred_check
        _
      $region42: #{tpu_custom_call.1} parent=5 // pred_check_branch
        %286 = sbr.rel (%p283) target = $region44
      $region43: #{tpu_custom_call.1} parent=5 // pred_region
        %s287 = ssub.s32 %s21, 1
        %s288 = sand.u32 %s34, 1
        %s289 = scalar_lea.sflag [#allocation3], %s288
        %s290 = sand.u32 %s34, 1
        %s291 = smul.addr %s290, 32
        %s292 = scalar_lea.vmem [#allocation2], %s291
        // Predicated region
        $region45: #{tpu_custom_call.1} parent=43 // pred_check
          %p293 = pneg %p47
        $region46: #{tpu_custom_call.1} parent=43 // pred_check_branch
          %295 = sbr.rel (%p293) target = $region48
        $region47: #{tpu_custom_call.1} parent=43 // pred_region
          %297 = dma.done %s289, 512
        $region48: #{tpu_custom_call.1} parent=43 // pred_fallthru
          _
        // Predicated region
        $region49: #{tpu_custom_call.1} parent=43 // pred_check
          %p298 = pneg %p68
        $region50: #{tpu_custom_call.1} parent=43 // pred_check_branch
          %300 = sbr.rel (%p298) target = $region52
        $region51: #{tpu_custom_call.1} parent=43 // pred_region
          %302 = dma.done [#allocation6], 8192
        $region52: #{tpu_custom_call.1} parent=43 // pred_fallthru
          _
        // Predicated region
        $region53: #{tpu_custom_call.1} parent=43 // pred_check
          %p303 = pneg %p152
        $region54: #{tpu_custom_call.1} parent=43 // pred_check_branch
          %305 = sbr.rel (%p303) target = $region56
        $region55: #{tpu_custom_call.1} parent=43 // pred_region
          %307 = dma.done [#allocation6], 128
        $region56: #{tpu_custom_call.1} parent=43 // pred_fallthru
          _
        %s308 = sand.u32 %s34, 1
        %s309 = scalar_lea.sflag [#allocation3], %s308
        %s310 = sand.u32 %s34, 1
        %s311 = smul.addr %s310, 32
        %s312 = scalar_lea.vmem [#allocation2], %s311
        %p313 = pneg %p47
        %p314 = pneg %p44
        %p315 = pneg %p68
        %p316 = pneg %p65
        %p317 = pneg %p89
        %p318 = pneg %p86
        %p319 = pneg %p110
        %p320 = pneg %p107
        %p321 = pneg %p131
        %p322 = pneg %p128
        %p323 = pneg %p152
        %p324 = pneg %p149
        %p325 = pneg %p178
        %p326 = pneg %p175
        %s327 = smul.u32 2, %s26
        %p328 = scmp.lt.s32.totalorder %s327, 3
        %s329 = scalar_select %p328, %s327, 3
        %s330 = smul.addr %s329, 2
        %s331 = scalar_lea.vmem %s6, %s330
        %p332 = pneg %p204
        %p333 = pneg %p201
        %s334 = sand.u32 %s191, 1
        %s335 = scalar_lea.sflag [#allocation4], %s334
        %s336 = sand.u32 %s191, 1
        %s337 = smul.addr %s336, 4
        %s338 = scalar_lea.vmem [#allocation8], %s337
        %s339 = smul.u32 2, %s26
        %s340 = smul.u32 2, %s26
        %p341 = scmp.lt.s32.totalorder %s340, 3
        %s342 = scalar_select %p341, %s340, 3
        %s343 = smul.addr %s342, 2
        %s344 = scalar_lea.vmem %s6, %s343
        %s345 = smul.u32 2, %s26
        %s346 = smul.u32 2, %s26
        %v348 = vld [vmem:[%s292] sm:$0xff]
        %v349 = vld [vmem:[%s292 + $0x8] sm:$0xff]
        %v350 = vld [vmem:[%s292 + $0x10] sm:$0xff]
        %v351 = vld [vmem:[%s292 + $0x18] sm:$0xff]
        %v352 = vld [vmem:[#allocation5] sm:$0xff]
        %v353 = vld [vmem:[#allocation5 + $0x8] sm:$0xff]
        %v354 = vld [vmem:[#allocation5 + $0x10] sm:$0xff]
        %v355 = vld [vmem:[#allocation5 + $0x18] sm:$0xff]
        %v356 = vld [vmem:[#allocation5 + $0x20] sm:$0xff]
        %v357 = vld [vmem:[#allocation5 + $0x28] sm:$0xff]
        %v358 = vld [vmem:[#allocation5 + $0x30] sm:$0xff]
        %v359 = vld [vmem:[#allocation5 + $0x38] sm:$0xff]
        %v360 = vld [vmem:[#allocation5 + $0x40] sm:$0xff]
        %v361 = vld [vmem:[#allocation5 + $0x48] sm:$0xff]
        %v362 = vld [vmem:[#allocation5 + $0x50] sm:$0xff]
        %v363 = vld [vmem:[#allocation5 + $0x58] sm:$0xff]
        %v364 = vld [vmem:[#allocation5 + $0x60] sm:$0xff]
        %v365 = vld [vmem:[#allocation5 + $0x68] sm:$0xff]
        %v366 = vld [vmem:[#allocation5 + $0x70] sm:$0xff]
        %v367 = vld [vmem:[#allocation5 + $0x78] sm:$0xff]
        %v368 = vld [vmem:[#allocation5 + $0x80] sm:$0xff]
        %v369 = vld [vmem:[#allocation5 + $0x88] sm:$0xff]
        %v370 = vld [vmem:[#allocation5 + $0x90] sm:$0xff]
        %v371 = vld [vmem:[#allocation5 + $0x98] sm:$0xff]
        %v372 = vld [vmem:[#allocation5 + $0xa0] sm:$0xff]
        %v373 = vld [vmem:[#allocation5 + $0xa8] sm:$0xff]
        %v374 = vld [vmem:[#allocation5 + $0xb0] sm:$0xff]
        %v375 = vld [vmem:[#allocation5 + $0xb8] sm:$0xff]
        %v376 = vld [vmem:[#allocation5 + $0xc0] sm:$0xff]
        %v377 = vld [vmem:[#allocation5 + $0xc8] sm:$0xff]
        %v378 = vld [vmem:[#allocation5 + $0xd0] sm:$0xff]
        %v379 = vld [vmem:[#allocation5 + $0xd8] sm:$0xff]
        %v380 = vld [vmem:[#allocation5 + $0xe0] sm:$0xff]
        %v381 = vld [vmem:[#allocation5 + $0xe8] sm:$0xff]
        %v382 = vld [vmem:[#allocation5 + $0xf0] sm:$0xff]
        %v383 = vld [vmem:[#allocation5 + $0xf8] sm:$0xff]
        %v384 = vld [vmem:[#allocation5 + $0x100] sm:$0xff]
        %v385 = vld [vmem:[#allocation5 + $0x108] sm:$0xff]
        %v386 = vld [vmem:[#allocation5 + $0x110] sm:$0xff]
        %v387 = vld [vmem:[#allocation5 + $0x118] sm:$0xff]
        %v388 = vld [vmem:[#allocation5 + $0x120] sm:$0xff]
        %v389 = vld [vmem:[#allocation5 + $0x128] sm:$0xff]
        %v390 = vld [vmem:[#allocation5 + $0x130] sm:$0xff]
        %v391 = vld [vmem:[#allocation5 + $0x138] sm:$0xff]
        %v392 = vld [vmem:[#allocation5 + $0x140] sm:$0xff]
        %v393 = vld [vmem:[#allocation5 + $0x148] sm:$0xff]
        %v394 = vld [vmem:[#allocation5 + $0x150] sm:$0xff]
        %v395 = vld [vmem:[#allocation5 + $0x158] sm:$0xff]
        %v396 = vld [vmem:[#allocation5 + $0x160] sm:$0xff]
        %v397 = vld [vmem:[#allocation5 + $0x168] sm:$0xff]
        %v398 = vld [vmem:[#allocation5 + $0x170] sm:$0xff]
        %v399 = vld [vmem:[#allocation5 + $0x178] sm:$0xff]
        %v400 = vld [vmem:[#allocation5 + $0x180] sm:$0xff]
        %v401 = vld [vmem:[#allocation5 + $0x188] sm:$0xff]
        %v402 = vld [vmem:[#allocation5 + $0x190] sm:$0xff]
        %v403 = vld [vmem:[#allocation5 + $0x198] sm:$0xff]
        %v404 = vld [vmem:[#allocation5 + $0x1a0] sm:$0xff]
        %v405 = vld [vmem:[#allocation5 + $0x1a8] sm:$0xff]
        %v406 = vld [vmem:[#allocation5 + $0x1b0] sm:$0xff]
        %v407 = vld [vmem:[#allocation5 + $0x1b8] sm:$0xff]
        %v408 = vld [vmem:[#allocation5 + $0x1c0] sm:$0xff]
        %v409 = vld [vmem:[#allocation5 + $0x1c8] sm:$0xff]
        %v410 = vld [vmem:[#allocation5 + $0x1d0] sm:$0xff]
        %v411 = vld [vmem:[#allocation5 + $0x1d8] sm:$0xff]
        %v412 = vld [vmem:[#allocation5 + $0x1e0] sm:$0xff]
        %v413 = vld [vmem:[#allocation5 + $0x1e8] sm:$0xff]
        %v414 = vld [vmem:[#allocation5 + $0x1f0] sm:$0xff]
        %v415 = vld [vmem:[#allocation5 + $0x1f8] sm:$0xff]
        %v416 = vld [vmem:[%s2] sm:$0x3]
        %v418 = vperm.slane %v416, 0
        %v419 = vperm.slane %v416, 1
        %v426 = vunpack.c.l.b16 %v348
        %v427 = vunpack.c.h.b16 %v348
        %v428 = vunpack.c.l.b16 %v349
        %v429 = vunpack.c.h.b16 %v349
        %v430 = vunpack.c.l.b16 %v350
        %v431 = vunpack.c.h.b16 %v350
        %v432 = vunpack.c.l.b16 %v351
        %v433 = vunpack.c.h.b16 %v351
        %v434 = vpack.c.b16 %v430, %v426
        %v435 = vpack.c.b16 %v431, %v427
        %v436 = vpack.c.b16 %v432, %v428
        %v437 = vpack.c.b16 %v433, %v429
        %v506 = vunpack.c.l.b16 %v352
        %v507 = vunpack.c.h.b16 %v352
        %v508 = vunpack.c.l.b16 %v353
        %v509 = vunpack.c.h.b16 %v353
        %v510 = vunpack.c.l.b16 %v354
        %v511 = vunpack.c.h.b16 %v354
        %v512 = vunpack.c.l.b16 %v355
        %v513 = vunpack.c.h.b16 %v355
        %v514 = vunpack.c.l.b16 %v356
        %v515 = vunpack.c.h.b16 %v356
        %v516 = vunpack.c.l.b16 %v357
        %v517 = vunpack.c.h.b16 %v357
        %v518 = vunpack.c.l.b16 %v358
        %v519 = vunpack.c.h.b16 %v358
        %v520 = vunpack.c.l.b16 %v359
        %v521 = vunpack.c.h.b16 %v359
        %v522 = vunpack.c.l.b16 %v360
        %v523 = vunpack.c.h.b16 %v360
        %v524 = vunpack.c.l.b16 %v361
        %v525 = vunpack.c.h.b16 %v361
        %v526 = vunpack.c.l.b16 %v362
        %v527 = vunpack.c.h.b16 %v362
        %v528 = vunpack.c.l.b16 %v363
        %v529 = vunpack.c.h.b16 %v363
        %v530 = vunpack.c.l.b16 %v364
        %v531 = vunpack.c.h.b16 %v364
        %v532 = vunpack.c.l.b16 %v365
        %v533 = vunpack.c.h.b16 %v365
        %v534 = vunpack.c.l.b16 %v366
        %v535 = vunpack.c.h.b16 %v366
        %v536 = vunpack.c.l.b16 %v367
        %v537 = vunpack.c.h.b16 %v367
        %v538 = vunpack.c.l.b16 %v368
        %v539 = vunpack.c.h.b16 %v368
        %v540 = vunpack.c.l.b16 %v369
        %v541 = vunpack.c.h.b16 %v369
        %v542 = vunpack.c.l.b16 %v370
        %v543 = vunpack.c.h.b16 %v370
        %v544 = vunpack.c.l.b16 %v371
        %v545 = vunpack.c.h.b16 %v371
        %v546 = vunpack.c.l.b16 %v372
        %v547 = vunpack.c.h.b16 %v372
        %v548 = vunpack.c.l.b16 %v373
        %v549 = vunpack.c.h.b16 %v373
        %v550 = vunpack.c.l.b16 %v374
        %v551 = vunpack.c.h.b16 %v374
        %v552 = vunpack.c.l.b16 %v375
        %v553 = vunpack.c.h.b16 %v375
        %v554 = vunpack.c.l.b16 %v376
        %v555 = vunpack.c.h.b16 %v376
        %v556 = vunpack.c.l.b16 %v377
        %v557 = vunpack.c.h.b16 %v377
        %v558 = vunpack.c.l.b16 %v378
        %v559 = vunpack.c.h.b16 %v378
        %v560 = vunpack.c.l.b16 %v379
        %v561 = vunpack.c.h.b16 %v379
        %v562 = vunpack.c.l.b16 %v380
        %v563 = vunpack.c.h.b16 %v380
        %v564 = vunpack.c.l.b16 %v381
        %v565 = vunpack.c.h.b16 %v381
        %v566 = vunpack.c.l.b16 %v382
        %v567 = vunpack.c.h.b16 %v382
        %v568 = vunpack.c.l.b16 %v383
        %v569 = vunpack.c.h.b16 %v383
        %v570 = vunpack.c.l.b16 %v384
        %v571 = vunpack.c.h.b16 %v384
        %v572 = vunpack.c.l.b16 %v385
        %v573 = vunpack.c.h.b16 %v385
        %v574 = vunpack.c.l.b16 %v386
        %v575 = vunpack.c.h.b16 %v386
        %v576 = vunpack.c.l.b16 %v387
        %v577 = vunpack.c.h.b16 %v387
        %v578 = vunpack.c.l.b16 %v388
        %v579 = vunpack.c.h.b16 %v388
        %v580 = vunpack.c.l.b16 %v389
        %v581 = vunpack.c.h.b16 %v389
        %v582 = vunpack.c.l.b16 %v390
        %v583 = vunpack.c.h.b16 %v390
        %v584 = vunpack.c.l.b16 %v391
        %v585 = vunpack.c.h.b16 %v391
        %v586 = vunpack.c.l.b16 %v392
        %v587 = vunpack.c.h.b16 %v392
        %v588 = vunpack.c.l.b16 %v393
        %v589 = vunpack.c.h.b16 %v393
        %v590 = vunpack.c.l.b16 %v394
        %v591 = vunpack.c.h.b16 %v394
        %v592 = vunpack.c.l.b16 %v395
        %v593 = vunpack.c.h.b16 %v395
        %v594 = vunpack.c.l.b16 %v396
        %v595 = vunpack.c.h.b16 %v396
        %v596 = vunpack.c.l.b16 %v397
        %v597 = vunpack.c.h.b16 %v397
        %v598 = vunpack.c.l.b16 %v398
        %v599 = vunpack.c.h.b16 %v398
        %v600 = vunpack.c.l.b16 %v399
        %v601 = vunpack.c.h.b16 %v399
        %v602 = vunpack.c.l.b16 %v400
        %v603 = vunpack.c.h.b16 %v400
        %v604 = vunpack.c.l.b16 %v401
        %v605 = vunpack.c.h.b16 %v401
        %v606 = vunpack.c.l.b16 %v402
        %v607 = vunpack.c.h.b16 %v402
        %v608 = vunpack.c.l.b16 %v403
        %v609 = vunpack.c.h.b16 %v403
        %v610 = vunpack.c.l.b16 %v404
        %v611 = vunpack.c.h.b16 %v404
        %v612 = vunpack.c.l.b16 %v405
        %v613 = vunpack.c.h.b16 %v405
        %v614 = vunpack.c.l.b16 %v406
        %v615 = vunpack.c.h.b16 %v406
        %v616 = vunpack.c.l.b16 %v407
        %v617 = vunpack.c.h.b16 %v407
        %v618 = vunpack.c.l.b16 %v408
        %v619 = vunpack.c.h.b16 %v408
        %v620 = vunpack.c.l.b16 %v409
        %v621 = vunpack.c.h.b16 %v409
        %v622 = vunpack.c.l.b16 %v410
        %v623 = vunpack.c.h.b16 %v410
        %v624 = vunpack.c.l.b16 %v411
        %v625 = vunpack.c.h.b16 %v411
        %v626 = vunpack.c.l.b16 %v412
        %v627 = vunpack.c.h.b16 %v412
        %v628 = vunpack.c.l.b16 %v413
        %v629 = vunpack.c.h.b16 %v413
        %v630 = vunpack.c.l.b16 %v414
        %v631 = vunpack.c.h.b16 %v414
        %v632 = vunpack.c.l.b16 %v415
        %v633 = vunpack.c.h.b16 %v415
        %v634 = vpack.c.b16 %v508, %v506
        %v635 = vpack.c.b16 %v509, %v507
        %v636 = vpack.c.b16 %v512, %v510
        %v637 = vpack.c.b16 %v513, %v511
        %v638 = vpack.c.b16 %v516, %v514
        %v639 = vpack.c.b16 %v517, %v515
        %v640 = vpack.c.b16 %v520, %v518
        %v641 = vpack.c.b16 %v521, %v519
        %v642 = vpack.c.b16 %v524, %v522
        %v643 = vpack.c.b16 %v525, %v523
        %v644 = vpack.c.b16 %v528, %v526
        %v645 = vpack.c.b16 %v529, %v527
        %v646 = vpack.c.b16 %v532, %v530
        %v647 = vpack.c.b16 %v533, %v531
        %v648 = vpack.c.b16 %v536, %v534
        %v649 = vpack.c.b16 %v537, %v535
        %v650 = vpack.c.b16 %v540, %v538
        %v651 = vpack.c.b16 %v541, %v539
        %v652 = vpack.c.b16 %v544, %v542
        %v653 = vpack.c.b16 %v545, %v543
        %v654 = vpack.c.b16 %v548, %v546
        %v655 = vpack.c.b16 %v549, %v547
        %v656 = vpack.c.b16 %v552, %v550
        %v657 = vpack.c.b16 %v553, %v551
        %v658 = vpack.c.b16 %v556, %v554
        %v659 = vpack.c.b16 %v557, %v555
        %v660 = vpack.c.b16 %v560, %v558
        %v661 = vpack.c.b16 %v561, %v559
        %v662 = vpack.c.b16 %v564, %v562
        %v663 = vpack.c.b16 %v565, %v563
        %v664 = vpack.c.b16 %v568, %v566
        %v665 = vpack.c.b16 %v569, %v567
        %v666 = vpack.c.b16 %v572, %v570
        %v667 = vpack.c.b16 %v573, %v571
        %v668 = vpack.c.b16 %v576, %v574
        %v669 = vpack.c.b16 %v577, %v575
        %v670 = vpack.c.b16 %v580, %v578
        %v671 = vpack.c.b16 %v581, %v579
        %v672 = vpack.c.b16 %v584, %v582
        %v673 = vpack.c.b16 %v585, %v583
        %v674 = vpack.c.b16 %v588, %v586
        %v675 = vpack.c.b16 %v589, %v587
        %v676 = vpack.c.b16 %v592, %v590
        %v677 = vpack.c.b16 %v593, %v591
        %v678 = vpack.c.b16 %v596, %v594
        %v679 = vpack.c.b16 %v597, %v595
        %v680 = vpack.c.b16 %v600, %v598
        %v681 = vpack.c.b16 %v601, %v599
        %v682 = vpack.c.b16 %v604, %v602
        %v683 = vpack.c.b16 %v605, %v603
        %v684 = vpack.c.b16 %v608, %v606
        %v685 = vpack.c.b16 %v609, %v607
        %v686 = vpack.c.b16 %v612, %v610
        %v687 = vpack.c.b16 %v613, %v611
        %v688 = vpack.c.b16 %v616, %v614
        %v689 = vpack.c.b16 %v617, %v615
        %v690 = vpack.c.b16 %v620, %v618
        %v691 = vpack.c.b16 %v621, %v619
        %v692 = vpack.c.b16 %v624, %v622
        %v693 = vpack.c.b16 %v625, %v623
        %v694 = vpack.c.b16 %v628, %v626
        %v695 = vpack.c.b16 %v629, %v627
        %v696 = vpack.c.b16 %v632, %v630
        %v697 = vpack.c.b16 %v633, %v631
        %762 = vmatpush.bf16.msra.mxu0 %v648
        %763 = vmatpush.bf16.msra.mxu0 %v646
        %764 = vmatpush.bf16.msra.mxu0 %v644
        %765 = vmatpush.bf16.msra.mxu0 %v642
        %766 = vmatpush.bf16.msra.mxu0 %v640
        %767 = vmatpush.bf16.msra.mxu0 %v638
        %768 = vmatpush.bf16.msra.mxu0 %v636
        %769 = vmatpush.bf16.msra.mxu0 %v634
        %770 = vmatmul.bf16.gmra.mxu0 %v434
        %v771 = vpop.f32.mrf.mxu0
        %v772 = vadd.f32 %v418, %v771
        %v773 = vpop.f32.mrf.mxu0
        %v774 = vadd.f32 %v418, %v773
        %775 = vdwg.mxu0
        %776 = vmatpush.bf16.msra.mxu0 %v664
        %777 = vmatpush.bf16.msra.mxu0 %v662
        %778 = vmatpush.bf16.msra.mxu0 %v660
        %779 = vmatpush.bf16.msra.mxu0 %v658
        %780 = vmatpush.bf16.msra.mxu0 %v656
        %781 = vmatpush.bf16.msra.mxu0 %v654
        %782 = vmatpush.bf16.msra.mxu0 %v652
        %783 = vmatpush.bf16.msra.mxu0 %v650
        %784 = vmatmul.bf16.gmra.mxu0 %v435
        %v785 = vpop.f32.mrf.mxu0
        %v786 = vadd.f32 %v772, %v785
        %v787 = vpop.f32.mrf.mxu0
        %v788 = vadd.f32 %v774, %v787
        %789 = vdwg.mxu0
        %790 = vmatpush.bf16.msra.mxu0 %v680
        %791 = vmatpush.bf16.msra.mxu0 %v678
        %792 = vmatpush.bf16.msra.mxu0 %v676
        %793 = vmatpush.bf16.msra.mxu0 %v674
        %794 = vmatpush.bf16.msra.mxu0 %v672
        %795 = vmatpush.bf16.msra.mxu0 %v670
        %796 = vmatpush.bf16.msra.mxu0 %v668
        %797 = vmatpush.bf16.msra.mxu0 %v666
        %798 = vmatmul.bf16.gmra.mxu0 %v436
        %v799 = vpop.f32.mrf.mxu0
        %v800 = vadd.f32 %v786, %v799
        %v801 = vpop.f32.mrf.mxu0
        %v802 = vadd.f32 %v788, %v801
        %803 = vdwg.mxu0
        %804 = vmatpush.bf16.msra.mxu0 %v696
        %805 = vmatpush.bf16.msra.mxu0 %v694
        %806 = vmatpush.bf16.msra.mxu0 %v692
        %807 = vmatpush.bf16.msra.mxu0 %v690
        %808 = vmatpush.bf16.msra.mxu0 %v688
        %809 = vmatpush.bf16.msra.mxu0 %v686
        %810 = vmatpush.bf16.msra.mxu0 %v684
        %811 = vmatpush.bf16.msra.mxu0 %v682
        %812 = vmatmul.bf16.gmra.mxu0 %v437
        %v813 = vpop.f32.mrf.mxu0
        %v814 = vadd.f32 %v800, %v813
        %v815 = vpop.f32.mrf.mxu0
        %v816 = vadd.f32 %v802, %v815
        %817 = vdwg.mxu0
        %818 = vmatpush.bf16.msra.mxu0 %v649
        %819 = vmatpush.bf16.msra.mxu0 %v647
        %820 = vmatpush.bf16.msra.mxu0 %v645
        %821 = vmatpush.bf16.msra.mxu0 %v643
        %822 = vmatpush.bf16.msra.mxu0 %v641
        %823 = vmatpush.bf16.msra.mxu0 %v639
        %824 = vmatpush.bf16.msra.mxu0 %v637
        %825 = vmatpush.bf16.msra.mxu0 %v635
        %826 = vmatmul.bf16.gmra.mxu0 %v434
        %v827 = vpop.f32.mrf.mxu0
        %v828 = vadd.f32 %v419, %v827
        %v829 = vpop.f32.mrf.mxu0
        %v830 = vadd.f32 %v419, %v829
        %831 = vdwg.mxu0
        %832 = vmatpush.bf16.msra.mxu0 %v665
        %833 = vmatpush.bf16.msra.mxu0 %v663
        %834 = vmatpush.bf16.msra.mxu0 %v661
        %835 = vmatpush.bf16.msra.mxu0 %v659
        %836 = vmatpush.bf16.msra.mxu0 %v657
        %837 = vmatpush.bf16.msra.mxu0 %v655
        %838 = vmatpush.bf16.msra.mxu0 %v653
        %839 = vmatpush.bf16.msra.mxu0 %v651
        %840 = vmatmul.bf16.gmra.mxu0 %v435
        %v841 = vpop.f32.mrf.mxu0
        %v842 = vadd.f32 %v828, %v841
        %v843 = vpop.f32.mrf.mxu0
        %v844 = vadd.f32 %v830, %v843
        %845 = vdwg.mxu0
        %846 = vmatpush.bf16.msra.mxu0 %v681
        %847 = vmatpush.bf16.msra.mxu0 %v679
        %848 = vmatpush.bf16.msra.mxu0 %v677
        %849 = vmatpush.bf16.msra.mxu0 %v675
        %850 = vmatpush.bf16.msra.mxu0 %v673
        %851 = vmatpush.bf16.msra.mxu0 %v671
        %852 = vmatpush.bf16.msra.mxu0 %v669
        %853 = vmatpush.bf16.msra.mxu0 %v667
        %854 = vmatmul.bf16.gmra.mxu0 %v436
        %v855 = vpop.f32.mrf.mxu0
        %v856 = vadd.f32 %v842, %v855
        %v857 = vpop.f32.mrf.mxu0
        %v858 = vadd.f32 %v844, %v857
        %859 = vdwg.mxu0
        %860 = vmatpush.bf16.msra.mxu0 %v697
        %861 = vmatpush.bf16.msra.mxu0 %v695
        %862 = vmatpush.bf16.msra.mxu0 %v693
        %863 = vmatpush.bf16.msra.mxu0 %v691
        %864 = vmatpush.bf16.msra.mxu0 %v689
        %865 = vmatpush.bf16.msra.mxu0 %v687
        %866 = vmatpush.bf16.msra.mxu0 %v685
        %867 = vmatpush.bf16.msra.mxu0 %v683
        %868 = vmatmul.bf16.gmra.mxu0 %v437
        %v869 = vpop.f32.mrf.mxu0
        %v870 = vadd.f32 %v856, %v869
        %v871 = vpop.f32.mrf.mxu0
        %v872 = vadd.f32 %v858, %v871
        %873 = vdwg.mxu0
        %v874 = vtanh.pop %v814
        %v875 = vtanh.pop %v816
        %v876 = vxor.u32 %v870, 2147483648
        %v877 = vxor.u32 %v872, 2147483648
        %v878 = vmul.f32 %v876, 1.442695
        %v879 = vpow.pop %v878
        %v880 = vmul.f32 %v877, 1.442695
        %v881 = vpow.pop %v880
        %v882 = vadd.f32 %v879, 1.0
        %v883 = vadd.f32 %v881, 1.0
        %v884 = vrcp.pop %v882
        %v885 = vmul.f32 %v882, %v884
        %v886 = vsub.f32 1.0, %v885
        %v887 = vmul.f32 %v884, %v886
        %v888 = vadd.f32 %v884, %v887
        %vm889 = vweird.f32 %v882
        %vm890 = vweird.f32 %v884
        %vm891 = vmor %vm889, %vm890
        %v892 = vsel %vm891, %v884, %v888
        %v893 = vand.u32 2147483647, %v882
        %vm894 = vcmp.eq.f32.partialorder %v893, 8.507059e+37
        %v895 = vand.u32 %v882, 2147483648
        %v896 = vor.u32 1.1754944e-38, %v895
        %v897 = vsel %vm894, %v896, %v892
        %v898 = vmul.f32 1.0, %v897
        %v899 = vrcp.pop %v883
        %v900 = vmul.f32 %v883, %v899
        %v901 = vsub.f32 1.0, %v900
        %v902 = vmul.f32 %v899, %v901
        %v903 = vadd.f32 %v899, %v902
        %vm904 = vweird.f32 %v883
        %vm905 = vweird.f32 %v899
        %vm906 = vmor %vm904, %vm905
        %v907 = vsel %vm906, %v899, %v903
        %v908 = vand.u32 2147483647, %v883
        %vm909 = vcmp.eq.f32.partialorder %v908, 8.507059e+37
        %v910 = vand.u32 %v883, 2147483648
        %v911 = vor.u32 1.1754944e-38, %v910
        %v912 = vsel %vm909, %v911, %v907
        %v913 = vmul.f32 1.0, %v912
        %v914 = vmul.f32 %v874, %v898
        %v915 = vmul.f32 %v875, %v913
        %v916 = vpack.c.bf16 %v914, %v914
        %v917 = vpack.c.bf16 %v915, %v915
        %v918 = vld [vmem:[%s3] sm:$0x1]
        %v919 = vld [vmem:[%s4] sm:$0x3]
        %921 = vset.pattern.permute.xlu0 0
        %922 = vperm.xlu0 %921, %v919
        %v923 = vpop.permute.xlu0 %922
        %925 = vmatpush.bf16.xpose.msra.mxu0 0
        %926 = vmatpush.bf16.xpose.msra.mxu0 0
        %927 = vmatpush.bf16.xpose.msra.mxu0 0
        %928 = vmatpush.bf16.xpose.msra.mxu0 0
        %929 = vmatpush.bf16.xpose.msra.mxu0 0
        %930 = vmatpush.bf16.xpose.msra.mxu0 0
        %931 = vmatpush.bf16.xpose.msra.mxu0 0
        %932 = vmatpush.bf16.xpose.msra.mxu0 %v916
        %933 = vmatmul.bf16.gmra.mxu0 %v918
        %v934 = vpop.f32.mrf.mxu0
        %v935 = vadd.f32 %v923, %v934
        %v936 = vpop.f32.mrf.mxu0
        %937 = vdwg.mxu0
        %938 = vmatpush.bf16.xpose.msra.mxu0 0
        %939 = vmatpush.bf16.xpose.msra.mxu0 0
        %940 = vmatpush.bf16.xpose.msra.mxu0 0
        %941 = vmatpush.bf16.xpose.msra.mxu0 0
        %942 = vmatpush.bf16.xpose.msra.mxu0 0
        %943 = vmatpush.bf16.xpose.msra.mxu0 0
        %944 = vmatpush.bf16.xpose.msra.mxu0 0
        %945 = vmatpush.bf16.xpose.msra.mxu0 %v917
        %946 = vmatmul.bf16.gmra.mxu0 %v918
        %v947 = vpop.f32.mrf.mxu0
        %v948 = vadd.f32 %v923, %v947
        %v949 = vpop.f32.mrf.mxu0
        %950 = vdwg.mxu0
        %vm951 = vcmask 58368
        %v952 = vsel %vm951, %v935, -inf
        %953 = vmax.xlane.f32.xlu0 %v952
        %v954 = vpop.xlane.xlu0 %953
        %v955 = vsel %vm951, %v948, -inf
        %956 = vmax.xlane.f32.xlu0 %v955
        %v957 = vpop.xlane.xlu0 %956
        %v958 = vsub.f32 %v935, %v954
        %v959 = vsub.f32 %v948, %v957
        %v960 = vmul.f32 %v958, 1.442695
        %v961 = vpow.pop %v960
        %v962 = vmul.f32 %v959, 1.442695
        %v963 = vpow.pop %v962
        %v964 = vsel %vm951, %v961, 0.0
        %965 = vadd.xlane.f32.xlu0 %v964
        %v966 = vpop.xlane.xlu0 %965
        %v967 = vsel %vm951, %v963, 0.0
        %968 = vadd.xlane.f32.xlu0 %v967
        %v969 = vpop.xlane.xlu0 %968
        %v970 = vrcp.pop %v966
        %v971 = vrcp.pop %v969
        %v972 = vmul.f32 %v961, %v970
        %v973 = vmul.f32 %v963, %v971
        %974 = vst.msk [vmem:[%s338] sm:$0x3] %vm951, %v972
        %975 = vst.msk [vmem:[%s338 + $0x2] sm:$0x3] %vm951, %v973
        %v976 = vpack.c.bf16 %v972, %v972
        %v977 = vpack.c.bf16 %v973, %v973
        %v978 = vpack.c.b16 %v426, %v426
        %v979 = vpack.c.b16 %v427, %v427
        %v980 = vpack.c.b16 %v428, %v428
        %v981 = vpack.c.b16 %v429, %v429
        %vm982 = vcmask 64512
        %v984 = vsel %vm982, %v976, 0
        %vm986 = vcmask 1043456
        %v988 = vsel %vm986, %v978, 0
        %v991 = vsel %vm986, %v979, 0
        %v994 = vsel %vm986, %v980, 0
        %v997 = vsel %vm986, %v981, 0
        %999 = vmatpush.bf16.msra.mxu0 0
        %1000 = vmatpush.bf16.msra.mxu0 0
        %1001 = vmatpush.bf16.msra.mxu0 0
        %1002 = vmatpush.bf16.msra.mxu0 0
        %1003 = vmatpush.bf16.msra.mxu0 0
        %1004 = vmatpush.bf16.msra.mxu0 0
        %1005 = vmatpush.bf16.msra.mxu0 0
        %1006 = vmatpush.bf16.msra.mxu0 %v988
        %1007 = vmatmul.bf16.gmra.mxu0 %v984
        %v1008 = vpop.f32.mrf.mxu0
        %v1009 = vadd.f32 0.0, %v1008
        %v1010 = vpop.f32.mrf.mxu0
        %1011 = vdwg.mxu0
        %1012 = vmatpush.bf16.msra.mxu0 0
        %1013 = vmatpush.bf16.msra.mxu0 0
        %1014 = vmatpush.bf16.msra.mxu0 0
        %1015 = vmatpush.bf16.msra.mxu0 0
        %1016 = vmatpush.bf16.msra.mxu0 0
        %1017 = vmatpush.bf16.msra.mxu0 0
        %1018 = vmatpush.bf16.msra.mxu0 0
        %1019 = vmatpush.bf16.msra.mxu0 %v991
        %1020 = vmatmul.bf16.gmra.mxu0 %v984
        %v1021 = vpop.f32.mrf.mxu0
        %v1022 = vadd.f32 0.0, %v1021
        %v1023 = vpop.f32.mrf.mxu0
        %1024 = vdwg.mxu0
        %1025 = vmatpush.bf16.msra.mxu0 0
        %1026 = vmatpush.bf16.msra.mxu0 0
        %1027 = vmatpush.bf16.msra.mxu0 0
        %1028 = vmatpush.bf16.msra.mxu0 0
        %1029 = vmatpush.bf16.msra.mxu0 0
        %1030 = vmatpush.bf16.msra.mxu0 0
        %1031 = vmatpush.bf16.msra.mxu0 0
        %1032 = vmatpush.bf16.msra.mxu0 %v994
        %1033 = vmatmul.bf16.gmra.mxu0 %v984
        %v1034 = vpop.f32.mrf.mxu0
        %v1035 = vadd.f32 0.0, %v1034
        %v1036 = vpop.f32.mrf.mxu0
        %1037 = vdwg.mxu0
        %1038 = vmatpush.bf16.msra.mxu0 0
        %1039 = vmatpush.bf16.msra.mxu0 0
        %1040 = vmatpush.bf16.msra.mxu0 0
        %1041 = vmatpush.bf16.msra.mxu0 0
        %1042 = vmatpush.bf16.msra.mxu0 0
        %1043 = vmatpush.bf16.msra.mxu0 0
        %1044 = vmatpush.bf16.msra.mxu0 0
        %1045 = vmatpush.bf16.msra.mxu0 %v997
        %1046 = vmatmul.bf16.gmra.mxu0 %v984
        %v1047 = vpop.f32.mrf.mxu0
        %v1048 = vadd.f32 0.0, %v1047
        %v1049 = vpop.f32.mrf.mxu0
        %1050 = vdwg.mxu0
        %v1051 = vpack.c.b16 %v430, %v430
        %v1052 = vpack.c.b16 %v431, %v431
        %v1053 = vpack.c.b16 %v432, %v432
        %v1054 = vpack.c.b16 %v433, %v433
        %v1056 = vsel %vm982, %v977, 0
        %v1059 = vsel %vm986, %v1051, 0
        %v1062 = vsel %vm986, %v1052, 0
        %v1065 = vsel %vm986, %v1053, 0
        %v1068 = vsel %vm986, %v1054, 0
        %1070 = vmatpush.bf16.msra.mxu0 0
        %1071 = vmatpush.bf16.msra.mxu0 0
        %1072 = vmatpush.bf16.msra.mxu0 0
        %1073 = vmatpush.bf16.msra.mxu0 0
        %1074 = vmatpush.bf16.msra.mxu0 0
        %1075 = vmatpush.bf16.msra.mxu0 0
        %1076 = vmatpush.bf16.msra.mxu0 0
        %1077 = vmatpush.bf16.msra.mxu0 %v1059
        %1078 = vmatmul.bf16.gmra.mxu0 %v1056
        %v1079 = vpop.f32.mrf.mxu0
        %v1080 = vadd.f32 0.0, %v1079
        %v1081 = vpop.f32.mrf.mxu0
        %1082 = vdwg.mxu0
        %1083 = vmatpush.bf16.msra.mxu0 0
        %1084 = vmatpush.bf16.msra.mxu0 0
        %1085 = vmatpush.bf16.msra.mxu0 0
        %1086 = vmatpush.bf16.msra.mxu0 0
        %1087 = vmatpush.bf16.msra.mxu0 0
        %1088 = vmatpush.bf16.msra.mxu0 0
        %1089 = vmatpush.bf16.msra.mxu0 0
        %1090 = vmatpush.bf16.msra.mxu0 %v1062
        %1091 = vmatmul.bf16.gmra.mxu0 %v1056
        %v1092 = vpop.f32.mrf.mxu0
        %v1093 = vadd.f32 0.0, %v1092
        %v1094 = vpop.f32.mrf.mxu0
        %1095 = vdwg.mxu0
        %1096 = vmatpush.bf16.msra.mxu0 0
        %1097 = vmatpush.bf16.msra.mxu0 0
        %1098 = vmatpush.bf16.msra.mxu0 0
        %1099 = vmatpush.bf16.msra.mxu0 0
        %1100 = vmatpush.bf16.msra.mxu0 0
        %1101 = vmatpush.bf16.msra.mxu0 0
        %1102 = vmatpush.bf16.msra.mxu0 0
        %1103 = vmatpush.bf16.msra.mxu0 %v1065
        %1104 = vmatmul.bf16.gmra.mxu0 %v1056
        %v1105 = vpop.f32.mrf.mxu0
        %v1106 = vadd.f32 0.0, %v1105
        %v1107 = vpop.f32.mrf.mxu0
        %1108 = vdwg.mxu0
        %1109 = vmatpush.bf16.msra.mxu0 0
        %1110 = vmatpush.bf16.msra.mxu0 0
        %1111 = vmatpush.bf16.msra.mxu0 0
        %1112 = vmatpush.bf16.msra.mxu0 0
        %1113 = vmatpush.bf16.msra.mxu0 0
        %1114 = vmatpush.bf16.msra.mxu0 0
        %1115 = vmatpush.bf16.msra.mxu0 0
        %1116 = vmatpush.bf16.msra.mxu0 %v1068
        %1117 = vmatmul.bf16.gmra.mxu0 %v1056
        %v1118 = vpop.f32.mrf.mxu0
        %v1119 = vadd.f32 0.0, %v1118
        %v1120 = vpop.f32.mrf.mxu0
        %1121 = vdwg.mxu0
        %v1122 = vld [vmem:[#allocation7] sm:$0xff]
        %1124 = vst [vmem:[#allocation1] ss:$4 sm:$0xff] %v1122
        %v1125 = vld.sshfl [vmem:[#allocation1] sm:$0xff pattern:$0x73625140]
        %v1126 = vld.sshfl [vmem:[#allocation1 + $0x8] sm:$0xff pattern:$0x73625140]
        %v1127 = vld.sshfl [vmem:[#allocation1 + $0x10] sm:$0xff pattern:$0x73625140]
        %v1128 = vld.sshfl [vmem:[#allocation1 + $0x18] sm:$0xff pattern:$0x73625140]
        %s1129 = scalar_lea.vmem [#allocation1], 32
        %1130 = vst [vmem:[%s1129] ss:$4 sm:$0xff] %v1122
        %v1131 = vld.sshfl [vmem:[#allocation1 + $0x20] sm:$0xff pattern:$0x73625140]
        %v1132 = vld.sshfl [vmem:[#allocation1 + $0x28] sm:$0xff pattern:$0x73625140]
        %v1133 = vld.sshfl [vmem:[#allocation1 + $0x30] sm:$0xff pattern:$0x73625140]
        %v1134 = vld.sshfl [vmem:[#allocation1 + $0x38] sm:$0xff pattern:$0x73625140]
        %v1143 = vmul.f32 %v1009, %v1125
        %v1144 = vmul.f32 %v1022, %v1126
        %v1145 = vmul.f32 %v1035, %v1127
        %v1146 = vmul.f32 %v1048, %v1128
        %v1147 = vmul.f32 %v1080, %v1131
        %v1148 = vmul.f32 %v1093, %v1132
        %v1149 = vmul.f32 %v1106, %v1133
        %v1150 = vmul.f32 %v1119, %v1134
        %vm1151 = vcmask 1041408
        %v1152 = vsel %vm1151, %v1143, 0.0
        %v1153 = vsel %vm1151, %v1144, 0.0
        %v1154 = vadd.f32 %v1152, %v1153
        %v1155 = vsel %vm1151, %v1145, 0.0
        %v1156 = vadd.f32 %v1154, %v1155
        %v1157 = vsel %vm1151, %v1146, 0.0
        %v1158 = vadd.f32 %v1156, %v1157
        %1159 = vadd.xlane.f32.xlu0 %v1158
        %v1160 = vpop.xlane.xlu0 %1159
        %v1161 = vsel %vm1151, %v1147, 0.0
        %v1162 = vsel %vm1151, %v1148, 0.0
        %v1163 = vadd.f32 %v1161, %v1162
        %v1164 = vsel %vm1151, %v1149, 0.0
        %v1165 = vadd.f32 %v1163, %v1164
        %v1166 = vsel %vm1151, %v1150, 0.0
        %v1167 = vadd.f32 %v1165, %v1166
        %1168 = vadd.xlane.f32.xlu0 %v1167
        %v1169 = vpop.xlane.xlu0 %1168
        %vm1170 = vcmask 1024
        %1171 = vst.msk [vmem:[%s344] sm:$0x3] %vm1170, %v1160
        %1172 = vst.msk [vmem:[%s344 + $0x2] sm:$0x3] %vm1170, %v1169
        %s1173 = smul.u32 2, %s26
        %p1174 = scmp.lt.s32.totalorder %s1173, 3
        %s1175 = scalar_select %p1174, %s1173, 3
        %s1176 = smul.addr %s1175, 2
        %s1177 = scalar_lea.vmem %s6, %s1176
        %s1178 = sand.u32 %s191, 1
        %s1179 = scalar_lea.sflag [#allocation4], %s1178
        %s1180 = sand.u32 %s191, 1
        %s1181 = smul.addr %s1180, 4
        %s1182 = scalar_lea.vmem [#allocation8], %s1181
        // Predicated region
        $region57: #{tpu_custom_call.1} parent=43 // pred_check
          %p1183 = pneg %p175
        $region58: #{tpu_custom_call.1} parent=43 // pred_check_branch
          %1185 = sbr.rel (%p1183) target = $region60
        $region59: #{tpu_custom_call.1} parent=43 // pred_region
          %s1186 = smul.u32 2, %s26
        $region60: #{tpu_custom_call.1} parent=43 // pred_fallthru
          _
        // Predicated region
        $region61: #{tpu_custom_call.1} parent=43 // pred_check
          %p1187 = pneg %p201
        $region62: #{tpu_custom_call.1} parent=43 // pred_check_branch
          %1189 = sbr.rel (%p1187) target = $region64
        $region63: #{tpu_custom_call.1} parent=43 // pred_region
          %s1190 = smul.u32 2, %s26
          %1192 = vsyncadd %s1179, 0
          %s1193 = smul.addr %s1190, 2
          %s1194 = scalar_lea.hbm %s7, %s1193
          %s1195 = sshll.u32 %s1182, 4
          %s1196 = int_to_ptr.vmem [resolvable:$true] %s1195
          %s1197 = sshll.u32 %s1194, 4
          %s1198 = int_to_ptr.hbm [resolvable:$true] %s1197
          %1203 = dma.vmem_to_hbm [thread:$0]  %s1196, 64, %s1198, %s1179, 32, 32, 2
        $region64: #{tpu_custom_call.1} parent=43 // pred_fallthru
          _
      $region44: #{tpu_custom_call.1} parent=5 // pred_fallthru
        _
      %p1204 = scmp.le.s32.totalorder 2, %s21
      // Predicated region
      $region65: #{tpu_custom_call.1} parent=5 // pred_check
        %p1205 = pneg %p1204
      $region66: #{tpu_custom_call.1} parent=5 // pred_check_branch
        %1207 = sbr.rel (%p1205) target = $region68
      $region67: #{tpu_custom_call.1} parent=5 // pred_region
        %s1208 = ssub.s32 %s21, 2
        // Predicated region
        $region69: #{tpu_custom_call.1} parent=67 // pred_check
          %p1209 = pneg %p181
        $region70: #{tpu_custom_call.1} parent=67 // pred_check_branch
          %1211 = sbr.rel (%p1209) target = $region72
        $region71: #{tpu_custom_call.1} parent=67 // pred_region
          %s1212 = smul.u32 2, %s27
          %p1213 = scmp.lt.s32.totalorder %s1212, 3
          %s1214 = scalar_select %p1213, %s1212, 3
          %s1215 = smul.addr %s1214, 2
          %s1216 = scalar_lea.vmem %s6, %s1215
        $region72: #{tpu_custom_call.1} parent=67 // pred_fallthru
          _
        // Predicated region
        $region73: #{tpu_custom_call.1} parent=67 // pred_check
          %p1217 = pneg %p207
        $region74: #{tpu_custom_call.1} parent=67 // pred_check_branch
          %1219 = sbr.rel (%p1217) target = $region76
        $region75: #{tpu_custom_call.1} parent=67 // pred_region
          %s1220 = sand.u32 %s192, 1
          %s1221 = scalar_lea.sflag [#allocation4], %s1220
          %s1222 = sand.u32 %s192, 1
          %s1223 = smul.addr %s1222, 4
          %s1224 = scalar_lea.vmem [#allocation8], %s1223
          %1226 = dma.done %s1221, 64
        $region76: #{tpu_custom_call.1} parent=67 // pred_fallthru
          _
      $region68: #{tpu_custom_call.1} parent=5 // pred_fallthru
        _
    $region6: #{tpu_custom_call.1} parent=1 // loop_footer
      %s25 = sadd.s32 1, %s21
    $region7: #{tpu_custom_call.1} parent=1 // loop_footer_branch
      %20 = sbr.rel target = $region3
    $region8: #{tpu_custom_call.1} parent=1 // loop_exit
      _
    %1227 = vsyncpa [#allocation3], 1
    %s1228 = scalar_lea.sflag [#allocation3], 1
    %1229 = vsyncpa %s1228, 1
    %1230 = vsyncpa [#allocation6], 1
    %1231 = vsyncpa [#allocation4], 1
    %s1232 = scalar_lea.sflag [#allocation4], 1
    %1233 = vsyncpa %s1232, 1

</llo_original>
